<compile_context>
chip_gen: v5e
topology: v5e:2x2
jax: 0.10.0
libtpu: 0.0.40
codegen_flags: <defaults>
</compile_context>

<pallas_src>
import functools

import jax
import jax.numpy as jnp
from jax.experimental import pallas as pl
from jax.experimental.pallas import tpu as pltpu

LAMBDA_ = 0.01
LANES = 128
SUBLANES = 8
NUM_CORES = 2                 # v7x megacore; harmless (serial) on v5e/v6e.
ACC_ROWS_MAX = 256            # strip height == accumulator height (128 KiB f32)
TILE_BYTES = 4 << 20          # 4 MiB per input per buffer
VMEM_LIMIT_BYTES = 48 << 20   # fits v7x's 64 MiB physical; >> defaults on v5e/v6e


def _round_up(x, m):
    return -(-x // m) * m


def _sublane_gran(dtype):
    return {4: 8, 2: 16}.get(jnp.dtype(dtype).itemsize, 32)


# --------------------------------------------------------------------------
# Fused kernel.
#   grid = (core, tile):  axis 0 "parallel" (v7x 2-TC split), axis 1
#   "arbitrary" (reduction over activation tiles).
#   BCE element (negated): t*log(r) + (1-t)*log(1-r), logs clamped at -100
#   (torch.nn.BCELoss); mean + sign + lambda scaling folded into the epilogue.
# --------------------------------------------------------------------------
def _ae_loss_kernel(*refs, n_weights, tile_rows, acc_rows, tiles_per_core,
                    valid_rows, inv_numel, lambda_, need_mask):
    r_ref, t_ref = refs[0], refs[1]
    w_refs = refs[2:2 + n_weights]
    out_ref = refs[2 + n_weights]
    acc_ref = refs[3 + n_weights]

    c = pl.program_id(0)   # parallel (core) axis
    i = pl.program_id(1)   # reduction (tile) axis

    @pl.when(i == 0)
    def _():
        acc_ref[...] = jnp.zeros_like(acc_ref)

    n_strips = tile_rows // acc_rows
    if need_mask:
        tile_row0 = (c * tiles_per_core + i) * tile_rows
        row_iota = jax.lax.broadcasted_iota(jnp.int32, (acc_rows, 1), 0)

    def strip_body(s):
        off = s * acc_rows
        if not isinstance(off, int):
            off = pl.multiple_of(off, acc_rows)
        r = r_ref[pl.ds(off, acc_rows), :].astype(jnp.float32)
        t = t_ref[pl.ds(off, acc_rows), :].astype(jnp.float32)
        if need_mask:
            # Rows past the true slab end (ragged last tile / clamped
            # out-of-range tile) are replaced by r = t = 1 BEFORE the logs, so
            # they contribute exactly zero and garbage never reaches log().
            valid = (tile_row0 + off + row_iota) < valid_rows
            r = jnp.where(valid, r, 1.0)
            t = jnp.where(valid, t, 1.0)
        log_r = jnp.maximum(jnp.log(r), -100.0)
        log_1mr = jnp.maximum(jnp.log(1.0 - r), -100.0)
        # t*log_r + (1-t)*log_1mr  ==  log_1mr + t*(log_r - log_1mr)
        acc_ref[...] += log_1mr + t * (log_r - log_1mr)

    if n_strips == 1:
        strip_body(0)
    else:
        pl.loop(0, n_strips)(strip_body)

    @pl.when(i == pl.num_programs(1) - 1)
    def _():
        bce_part = jnp.sum(acc_ref[...]) * (-inv_numel)   # single XLU reduce
        wsq = jnp.float32(0.0)
        for w_ref in w_refs:
            w = w_ref[...].astype(jnp.float32)
            wsq = wsq + jnp.sum(w * w)
        # Weight L2 added on core 0 only (avoid double counting across cores).
        val = bce_part + jnp.where(c == 0, (0.5 * lambda_) * wsq, 0.0)
        out_ref[...] = jnp.broadcast_to(val, out_ref.shape)


# --------------------------------------------------------------------------
# Host-side layout: flatten to a lane-dense (rows, 128) slab, keeping f32/bf16
# dtype as-is (upcast happens in-kernel).  The only copy is a tail pad to a
# multiple of 128 elements (pad value 1.0 -> zero BCE contribution), which
# never triggers for lane-aligned inputs.
# --------------------------------------------------------------------------
def _to_lane_slab(x):
    flat = x.reshape(-1)
    if flat.dtype != jnp.float32 and flat.dtype != jnp.bfloat16:
        flat = flat.astype(jnp.float32)
    n = flat.shape[0]
    rem = (-n) % LANES
    if rem:
        flat = jnp.concatenate([flat, jnp.full((rem,), 1.0, flat.dtype)])
    return flat.reshape((n + rem) // LANES, LANES)


# --------------------------------------------------------------------------
# Wrapper: the AELossL2 forward.  `linear_weights` stands in for iterating over
# the nn.Linear modules of the model.
# --------------------------------------------------------------------------
@functools.partial(jax.jit, static_argnames=("lambda_",))
def ae_loss_l2(recon, target, linear_weights=(), lambda_=LAMBDA_):
    numel = recon.size

    r2 = _to_lane_slab(recon)
    t2 = _to_lane_slab(target)
    rows = r2.shape[0]

    # nn.Linear weights are 2-D; flatten anything else to 2-D (cheap reshape).
    lw = tuple(w if w.ndim == 2 else w.reshape(w.shape[0], -1)
               for w in linear_weights)
    n_weights = len(lw)

    # --- tiling ------------------------------------------------------------
    gran = max(_sublane_gran(r2.dtype), _sublane_gran(t2.dtype))
    max_tile_rows = TILE_BYTES // (LANES * max(r2.dtype.itemsize,
                                               t2.dtype.itemsize))
    rows_half = -(-rows // NUM_CORES)
    tile_rows = min(max_tile_rows, _round_up(rows_half, gran))
    if tile_rows > ACC_ROWS_MAX:
        tile_rows = _round_up(tile_rows, ACC_ROWS_MAX)
    acc_rows = min(tile_rows, ACC_ROWS_MAX)
    tiles_per_core = -(-rows // (NUM_CORES * tile_rows))
    total_tiles = -(-rows // tile_rows)
    need_mask = (NUM_CORES * tiles_per_core * tile_rows != rows)
    grid = (NUM_CORES, tiles_per_core)

    def rt_index_map(c, i):
        idx = c * tiles_per_core + i
        if need_mask:
            # Clamp fully out-of-range tiles onto the last valid one; their
            # contribution is zeroed by the in-kernel row mask.
            idx = jnp.minimum(idx, total_tiles - 1)
        return (idx, 0)

    in_specs = [
        pl.BlockSpec((tile_rows, LANES), rt_index_map),
        pl.BlockSpec((tile_rows, LANES), rt_index_map),
    ]
    for w in lw:
        # Full-array resident weight block (constant index map -> DMA'd once
        # per core).  TODO(synk): stream tiles for very large weight matrices.
        in_specs.append(
            pl.BlockSpec(tuple(int(d) for d in w.shape), lambda c, i: (0, 0)))

    kernel = functools.partial(
        _ae_loss_kernel,
        n_weights=n_weights,
        tile_rows=tile_rows,
        acc_rows=acc_rows,
        tiles_per_core=tiles_per_core,
        valid_rows=rows,
        inv_numel=1.0 / float(numel),
        lambda_=float(lambda_),
        need_mask=need_mask,
    )

    out = pl.pallas_call(
        kernel,
        out_shape=jax.ShapeDtypeStruct((NUM_CORES, SUBLANES, LANES),
                                       jnp.float32),
        grid_spec=pltpu.PrefetchScalarGridSpec(
            num_scalar_prefetch=0,
            grid=grid,
            in_specs=in_specs,
            # Per-core lane-dense partial-sum block, indexed by the parallel
            # axis only (required so each core owns its own output block).
            out_specs=pl.BlockSpec((1, SUBLANES, LANES),
                                   lambda c, i: (c, 0, 0)),
            scratch_shapes=[pltpu.VMEM((acc_rows, LANES), jnp.float32)],
        ),
        compiler_params=pltpu.CompilerParams(
            dimension_semantics=("parallel", "arbitrary"),
            vmem_limit_bytes=VMEM_LIMIT_BYTES,
        ),
    )(r2, t2, *lw)

    # Combine the per-core partials (weight term already included once).
    return jnp.sum(out[:, 0, 0])


if __name__ == "__main__":
    key = jax.random.PRNGKey(0)
    k1, k2, k3, k4 = jax.random.split(key, 4)

    # Reconstruction / target: NCHW, recon must be in (0, 1) -> sigmoid.
    B, C, H, W = 2, 4, 16, 16
    recon = jax.nn.sigmoid(jax.random.normal(k1, (B, C, H, W), jnp.float32))
    target = jax.random.uniform(k2, (B, C, H, W), jnp.float32)

    # Synthetic autoencoder Linear weights (PyTorch (out_features, in_features)):
    #   encoder: Linear(256 -> 32), decoder: Linear(32 -> 256)
    w_enc = 0.1 * jax.random.normal(k3, (32, 256), jnp.float32)
    w_dec = 0.1 * jax.random.normal(k4, (256, 32), jnp.float32)
    weights = (w_enc, w_dec)

    loss = ae_loss_l2(recon, target, weights)
    loss = jax.block_until_ready(loss)

    # Pure-JAX reference (same math as torch BCELoss + L2 term).
    log_r = jnp.maximum(jnp.log(recon), -100.0)
    log_1mr = jnp.maximum(jnp.log(1.0 - recon), -100.0)
    bce_ref = jnp.mean(-(target * log_r + (1.0 - target) * log_1mr))
    ref = bce_ref + LAMBDA_ * (0.5 * jnp.sum(w_enc ** 2)
                               + 0.5 * jnp.sum(w_dec ** 2))
    assert jnp.allclose(loss, ref, rtol=1e-5, atol=1e-5), (loss, ref)

    print("KERNEL_OK")
</pallas_src>

<mosaic_0001>
module attributes {stable_mosaic.version = 11 : i64} {
  func.func @_ae_loss_kernel(%arg0: i32, %arg1: i32, %arg2: memref<8x128xf32, #tpu.memory_space<vmem>>, %arg3: memref<8x128xf32, #tpu.memory_space<vmem>>, %arg4: memref<32x256xf32, #tpu.memory_space<vmem>>, %arg5: memref<256x32xf32, #tpu.memory_space<vmem>>, %arg6: memref<1x8x128xf32, #tpu.memory_space<vmem>>, %arg7: memref<8x128xf32, #tpu.memory_space<vmem>>) attributes {dimension_semantics = [#tpu.dimension_semantics<parallel>, #tpu.dimension_semantics<arbitrary>], iteration_bounds = array<i64: 2, 1>, scalar_prefetch = 0 : i64, scratch_operands = 1 : i64, tpu.core_type = #tpu.core_type<tc>, window_params = [{transform_indices = @transform_0, window_bounds = array<i64: 8, 128>}, {transform_indices = @transform_1, window_bounds = array<i64: 8, 128>}, {pipeline_mode = #tpu.pipeline_mode<synchronous>, transform_indices = @transform_2, window_bounds = array<i64: 32, 256>}, {pipeline_mode = #tpu.pipeline_mode<synchronous>, transform_indices = @transform_3, window_bounds = array<i64: 256, 32>}, {transform_indices = @transform_4, window_bounds = array<i64: 1, 8, 128>}]} {
    %c0_i32 = arith.constant 0 : i32
    %0 = arith.cmpi eq, %arg1, %c0_i32 : i32
    %1 = arith.extui %0 : i1 to i32
    %c0_i32_0 = arith.constant 0 : i32
    %2 = arith.cmpi ne, %1, %c0_i32_0 : i32
    scf.if %2 {
      %cst_12 = arith.constant 0.000000e+00 : f32
      %22 = vector.broadcast %cst_12 : f32 to vector<8x128xf32>
      %c0_13 = arith.constant 0 : index
      %c0_14 = arith.constant 0 : index
      %23 = vector.load %arg7[%c0_13, %c0_14] : memref<8x128xf32, #tpu.memory_space<vmem>>, vector<8x128xf32>
      tpu.vector_store %arg7[%c0_13, %c0_14], %22 {strides = array<i32>} : memref<8x128xf32, #tpu.memory_space<vmem>>, vector<8x128xf32>,
    } else {
    }
    %c0 = arith.constant 0 : index
    %c0_1 = arith.constant 0 : index
    %3 = vector.load %arg2[%c0, %c0_1] : memref<8x128xf32, #tpu.memory_space<vmem>>, vector<8x128xf32>
    %c0_2 = arith.constant 0 : index
    %c0_3 = arith.constant 0 : index
    %4 = vector.load %arg3[%c0_2, %c0_3] : memref<8x128xf32, #tpu.memory_space<vmem>>, vector<8x128xf32>
    %5 = math.log %3 : vector<8x128xf32>
    %cst = arith.constant -1.000000e+02 : f32
    %6 = vector.broadcast %cst : f32 to vector<8x128xf32>
    %7 = arith.maximumf %5, %6 : vector<8x128xf32>
    %cst_4 = arith.constant 1.000000e+00 : f32
    %8 = vector.broadcast %cst_4 : f32 to vector<8x128xf32>
    %9 = arith.subf %8, %3 : vector<8x128xf32>
    %10 = math.log %9 : vector<8x128xf32>
    %cst_5 = arith.constant -1.000000e+02 : f32
    %11 = vector.broadcast %cst_5 : f32 to vector<8x128xf32>
    %12 = arith.maximumf %10, %11 : vector<8x128xf32>
    %c0_6 = arith.constant 0 : index
    %c0_7 = arith.constant 0 : index
    %13 = vector.load %arg7[%c0_6, %c0_7] : memref<8x128xf32, #tpu.memory_space<vmem>>, vector<8x128xf32>
    %14 = arith.subf %7, %12 : vector<8x128xf32>
    %15 = arith.mulf %4, %14 : vector<8x128xf32>
    %16 = arith.addf %12, %15 : vector<8x128xf32>
    %17 = arith.addf %13, %16 : vector<8x128xf32>
    %c0_8 = arith.constant 0 : index
    %c0_9 = arith.constant 0 : index
    %18 = vector.load %arg7[%c0_8, %c0_9] : memref<8x128xf32, #tpu.memory_space<vmem>>, vector<8x128xf32>
    tpu.vector_store %arg7[%c0_8, %c0_9], %17 {strides = array<i32>} : memref<8x128xf32, #tpu.memory_space<vmem>>, vector<8x128xf32>,
    %c0_i32_10 = arith.constant 0 : i32
    %19 = arith.cmpi eq, %arg1, %c0_i32_10 : i32
    %20 = arith.extui %19 : i1 to i32
    %c0_i32_11 = arith.constant 0 : i32
    %21 = arith.cmpi ne, %20, %c0_i32_11 : i32
    scf.if %21 {
      %c0_12 = arith.constant 0 : index
      %c0_13 = arith.constant 0 : index
      %22 = vector.load %arg7[%c0_12, %c0_13] : memref<8x128xf32, #tpu.memory_space<vmem>>, vector<8x128xf32>
      %23 = vector.shape_cast %22 : vector<8x128xf32> to vector<1x8x128xf32>
      %cst_14 = arith.constant dense<0.000000e+00> : vector<1xf32>
      %24 = vector.multi_reduction <add>, %23, %cst_14 [1, 2] : vector<1x8x128xf32> to vector<1xf32>
      %25 = vector.shape_cast %24 : vector<1xf32> to vector<1x1x1xf32>
      %26 = vector.extract %25[0, 0, 0] : f32 from vector<1x1x1xf32>
      %cst_15 = arith.constant -4.8828125E-4 : f32
      %27 = arith.mulf %26, %cst_15 : f32
      %c0_16 = arith.constant 0 : index
      %c0_17 = arith.constant 0 : index
      %28 = vector.load %arg4[%c0_16, %c0_17] : memref<32x256xf32, #tpu.memory_space<vmem>>, vector<32x256xf32>
      %29 = arith.mulf %28, %28 : vector<32x256xf32>
      %30 = vector.shape_cast %29 : vector<32x256xf32> to vector<1x32x256xf32>
      %cst_18 = arith.constant dense<0.000000e+00> : vector<1xf32>
      %31 = vector.multi_reduction <add>, %30, %cst_18 [1, 2] : vector<1x32x256xf32> to vector<1xf32>
      %32 = vector.shape_cast %31 : vector<1xf32> to vector<1x1x1xf32>
      %33 = vector.extract %32[0, 0, 0] : f32 from vector<1x1x1xf32>
      %cst_19 = arith.constant 0.000000e+00 : f32
      %34 = arith.addf %cst_19, %33 : f32
      %c0_20 = arith.constant 0 : index
      %c0_21 = arith.constant 0 : index
      %35 = vector.load %arg5[%c0_20, %c0_21] : memref<256x32xf32, #tpu.memory_space<vmem>>, vector<256x32xf32>
      %36 = arith.mulf %35, %35 : vector<256x32xf32>
      %37 = vector.shape_cast %36 : vector<256x32xf32> to vector<1x256x32xf32>
      %cst_22 = arith.constant dense<0.000000e+00> : vector<1xf32>
      %38 = vector.multi_reduction <add>, %37, %cst_22 [1, 2] : vector<1x256x32xf32> to vector<1xf32>
      %39 = vector.shape_cast %38 : vector<1xf32> to vector<1x1x1xf32>
      %40 = vector.extract %39[0, 0, 0] : f32 from vector<1x1x1xf32>
      %41 = arith.addf %34, %40 : f32
      %c0_i32_23 = arith.constant 0 : i32
      %42 = arith.cmpi eq, %arg0, %c0_i32_23 : i32
      %cst_24 = arith.constant 5.000000e-03 : f32
      %43 = arith.mulf %cst_24, %41 : f32
      %cst_25 = arith.constant 0.000000e+00 : f32
      %44 = arith.select %42, %43, %cst_25 : f32
      %45 = arith.addf %27, %44 : f32
      %46 = vector.broadcast %45 : f32 to vector<1x8x128xf32>
      %c0_26 = arith.constant 0 : index
      %c0_27 = arith.constant 0 : index
      %c0_28 = arith.constant 0 : index
      %47 = vector.load %arg6[%c0_26, %c0_27, %c0_28] : memref<1x8x128xf32, #tpu.memory_space<vmem>>, vector<1x8x128xf32>
      tpu.vector_store %arg6[%c0_26, %c0_27, %c0_28], %46 {strides = array<i32>} : memref<1x8x128xf32, #tpu.memory_space<vmem>>, vector<1x8x128xf32>,
    } else {
    }
    return
  }
  func.func @transform_0(%arg0: i32, %arg1: i32) -> (i32, i32) {
    %c1_i32 = arith.constant 1 : i32
    %0 = arith.muli %arg0, %c1_i32 : i32
    %1 = arith.addi %0, %arg1 : i32
    %c0_i32 = arith.constant 0 : i32
    %c0_i32_0 = arith.constant 0 : i32
    return %1, %c0_i32 : i32, i32
  }
  func.func @transform_1(%arg0: i32, %arg1: i32) -> (i32, i32) {
    %c1_i32 = arith.constant 1 : i32
    %0 = arith.muli %arg0, %c1_i32 : i32
    %1 = arith.addi %0, %arg1 : i32
    %c0_i32 = arith.constant 0 : i32
    %c0_i32_0 = arith.constant 0 : i32
    return %1, %c0_i32 : i32, i32
  }
  func.func @transform_2(%arg0: i32, %arg1: i32) -> (i32, i32) {
    %c0_i32 = arith.constant 0 : i32
    %c0_i32_0 = arith.constant 0 : i32
    %c0_i32_1 = arith.constant 0 : i32
    return %c0_i32, %c0_i32_0 : i32, i32
  }
  func.func @transform_3(%arg0: i32, %arg1: i32) -> (i32, i32) {
    %c0_i32 = arith.constant 0 : i32
    %c0_i32_0 = arith.constant 0 : i32
    %c0_i32_1 = arith.constant 0 : i32
    return %c0_i32, %c0_i32_0 : i32, i32
  }
  func.func @transform_4(%arg0: i32, %arg1: i32) -> (i32, i32, i32) {
    %c0_i32 = arith.constant 0 : i32
    %c0_i32_0 = arith.constant 0 : i32
    %c0_i32_1 = arith.constant 0 : i32
    return %arg0, %c0_i32, %c0_i32_0 : i32, i32, i32
  }
}

</mosaic_0001>

<llo_original>
// kernel: ae_loss_l2.1
$region0: #{ae_loss_l2.1}
  #allocation0 [shape = 'u32[]', space=smem, size = 0x4, offset = 0x4, fixed_abs, tag = 'smem constant byte address 0x4 - core index']
  #allocation1 [shape = 'u32[72,128]{1,0:T(1,128)}', space=vmem, size = 0x9000, scoped, tag = 'internal scratch']
  #allocation2 [shape = 'f32[8,128]{1,0:T(8,128)}', space=vmem, size = 0x1000, scoped, tag = 'scratch operand']
  %s0 = inlined_call_operand.vmem [shape: f32[16,128], index: 0, kind: input, shape index: {}]
  %s1 = inlined_call_operand.vmem [shape: f32[16,128], index: 1, kind: input, shape index: {}]
  %s2 = inlined_call_operand.vmem [shape: f32[32,256], index: 2, kind: input, shape index: {}]
  %s3 = inlined_call_operand.vmem [shape: f32[256,32], index: 3, kind: input, shape index: {}]
  %s4 = inlined_call_operand.vmem [shape: f32[2,8,128], index: 4, kind: output, shape index: {}]
  %s5 = sld [smem:[#allocation0]]
  $region57: #{ae_loss_l2.1} parent=0
    _
  %s7 = ssub.s32 1, %s5
  %s8 = scalar_select 0, %s7, %s5
  loop: start=0, step=1, limit=4
  $region2: #{ae_loss_l2.1} parent=0 // loop_pre_header
    _
  $region3: #{ae_loss_l2.1} parent=0 // loop_header
    %s10 = sphi 0, %s14
    %p11 = scmp.ge.s32.totalorder %s10, 4
    %s17 = sphi 0, %s29
    %s18 = sphi 0, %s25
    %s19 = sphi 0, %s17
    %s20 = sphi 0, %s18
    %s21 = sphi 0, %s19
    %s22 = sphi 0, %s20
    %s34 = sphi 0, %s36
    %s37 = sphi 0, %s34
    %s38 = sphi 0, %s37
    %s54 = sphi 0, %s38
    %s62 = sphi 0, %s64
    %s65 = sphi 0, %s62
    %s66 = sphi 0, %s65
    %s82 = sphi 0, %s66
    %s86 = sphi 0, %s86
    %s88 = sphi 0, %s86
    %s89 = sphi 0, %s88
    %s103 = sphi 0, %s89
    %s107 = sphi 0, %s107
    %s109 = sphi 0, %s107
    %s110 = sphi 0, %s109
    %s124 = sphi 0, %s110
    %s130 = sphi 0, %s132
    %s133 = sphi 0, %s130
    %s134 = sphi 0, %s133
    %s150 = sphi 0, %s134
  $region4: #{ae_loss_l2.1} parent=0 // loop_header_branch
    %13 = sbr.rel (%p11) target = $region8
  $region5: #{ae_loss_l2.1} parent=0 // loop_body
    %s15 = ssub.s32 %s10, 1
    %s16 = ssub.s32 %s10, 2
    %s23 = sadd.s32 1, %s18
    %p24 = scmp.ge.s32.totalorder %s23, 1
    %s25 = scalar_select %p24, 0, %s23
    %s26 = sadd.s32 1, %s17
    %s27 = scalar_select %p24, %s26, %s17
    %p28 = scmp.ge.s32.totalorder %s27, 2
    %s29 = scalar_select %p28, 0, %s27
    %s30 = sadd.s32 %s17, %s18
    %s31 = sadd.s32 %s29, %s25
    %s32 = ssub.s32 %s30, %s31
    %p33 = scmp.eq.s32.totalorder %s32, 0
    %s35 = sadd.s32 %s34, 1
    %s36 = scalar_select %p33, %s34, %s35
    %p39 = pneg %p33
    %p40 = scmp.eq.s32.totalorder %s10, 1
    %p41 = por %p39, %p40
    %p42 = scmp.ne.s32.totalorder %s34, %s37
    %p43 = scmp.eq.s32.totalorder %s10, 0
    %p44 = por %p42, %p43
    %p45 = scmp.ne.s32.totalorder %s34, %s37
    %p46 = scmp.eq.s32.totalorder %s15, 1
    %p47 = por %p45, %p46
    %p48 = scmp.ne.s32.totalorder %s37, %s38
    %p49 = scmp.eq.s32.totalorder %s15, 0
    %p50 = por %p48, %p49
    %p51 = scmp.ne.s32.totalorder %s37, %s38
    %p52 = scmp.eq.s32.totalorder %s16, 1
    %p53 = por %p51, %p52
    %p55 = scmp.ne.s32.totalorder %s38, %s54
    %p56 = scmp.eq.s32.totalorder %s16, 0
    %p57 = por %p55, %p56
    %s58 = sadd.s32 %s17, %s18
    %s59 = sadd.s32 %s29, %s25
    %s60 = ssub.s32 %s58, %s59
    %p61 = scmp.eq.s32.totalorder %s60, 0
    %s63 = sadd.s32 %s62, 1
    %s64 = scalar_select %p61, %s62, %s63
    %p67 = pneg %p61
    %p68 = scmp.eq.s32.totalorder %s10, 1
    %p69 = por %p67, %p68
    %p70 = scmp.ne.s32.totalorder %s62, %s65
    %p71 = scmp.eq.s32.totalorder %s10, 0
    %p72 = por %p70, %p71
    %p73 = scmp.ne.s32.totalorder %s62, %s65
    %p74 = scmp.eq.s32.totalorder %s15, 1
    %p75 = por %p73, %p74
    %p76 = scmp.ne.s32.totalorder %s65, %s66
    %p77 = scmp.eq.s32.totalorder %s15, 0
    %p78 = por %p76, %p77
    %p79 = scmp.ne.s32.totalorder %s65, %s66
    %p80 = scmp.eq.s32.totalorder %s16, 1
    %p81 = por %p79, %p80
    %p83 = scmp.ne.s32.totalorder %s66, %s82
    %p84 = scmp.eq.s32.totalorder %s16, 0
    %p85 = por %p83, %p84
    %s87 = sadd.s32 %s86, 1
    %p90 = scmp.eq.s32.totalorder %s10, 1
    %p91 = scmp.ne.s32.totalorder %s86, %s88
    %p92 = scmp.eq.s32.totalorder %s10, 0
    %p93 = por %p91, %p92
    %p94 = scmp.ne.s32.totalorder %s86, %s88
    %p95 = scmp.eq.s32.totalorder %s15, 1
    %p96 = por %p94, %p95
    %p97 = scmp.ne.s32.totalorder %s88, %s89
    %p98 = scmp.eq.s32.totalorder %s15, 0
    %p99 = por %p97, %p98
    %p100 = scmp.ne.s32.totalorder %s88, %s89
    %p101 = scmp.eq.s32.totalorder %s16, 1
    %p102 = por %p100, %p101
    %p104 = scmp.ne.s32.totalorder %s89, %s103
    %p105 = scmp.eq.s32.totalorder %s16, 0
    %p106 = por %p104, %p105
    %s108 = sadd.s32 %s107, 1
    %p111 = scmp.eq.s32.totalorder %s10, 1
    %p112 = scmp.ne.s32.totalorder %s107, %s109
    %p113 = scmp.eq.s32.totalorder %s10, 0
    %p114 = por %p112, %p113
    %p115 = scmp.ne.s32.totalorder %s107, %s109
    %p116 = scmp.eq.s32.totalorder %s15, 1
    %p117 = por %p115, %p116
    %p118 = scmp.ne.s32.totalorder %s109, %s110
    %p119 = scmp.eq.s32.totalorder %s15, 0
    %p120 = por %p118, %p119
    %p121 = scmp.ne.s32.totalorder %s109, %s110
    %p122 = scmp.eq.s32.totalorder %s16, 1
    %p123 = por %p121, %p122
    %p125 = scmp.ne.s32.totalorder %s110, %s124
    %p126 = scmp.eq.s32.totalorder %s16, 0
    %p127 = por %p125, %p126
    %s128 = ssub.s32 %s17, %s29
    %p129 = scmp.eq.s32.totalorder %s128, 0
    %s131 = sadd.s32 %s130, 1
    %s132 = scalar_select %p129, %s130, %s131
    %p135 = pneg %p129
    %p136 = scmp.eq.s32.totalorder %s10, 1
    %p137 = por %p135, %p136
    %p138 = scmp.ne.s32.totalorder %s130, %s133
    %p139 = scmp.eq.s32.totalorder %s10, 0
    %p140 = por %p138, %p139
    %p141 = scmp.ne.s32.totalorder %s130, %s133
    %p142 = scmp.eq.s32.totalorder %s15, 1
    %p143 = por %p141, %p142
    %p144 = scmp.ne.s32.totalorder %s133, %s134
    %p145 = scmp.eq.s32.totalorder %s15, 0
    %p146 = por %p144, %p145
    %p147 = scmp.ne.s32.totalorder %s133, %s134
    %p148 = scmp.eq.s32.totalorder %s16, 1
    %p149 = por %p147, %p148
    %p151 = scmp.ne.s32.totalorder %s134, %s150
    %p152 = scmp.eq.s32.totalorder %s16, 0
    %p153 = por %p151, %p152
    %p154 = scmp.le.s32.totalorder 1, %s10
    %p155 = scmp.lt.s32.totalorder %s10, 3
    %p156 = pnand %p154, %p155
    %p157 = pneg %p156
    // Predicated region
    $region9: #{ae_loss_l2.1} parent=5 // pred_check
      _
    $region10: #{ae_loss_l2.1} parent=5 // pred_check_branch
      %159 = sbr.rel (%p156) target = $region12
    $region11: #{ae_loss_l2.1} parent=5 // pred_region
      %s160 = ssub.s32 %s10, 1
      // Predicated region
      $region13: #{ae_loss_l2.1} parent=11 // pred_check
        %p161 = pneg %p99
      $region14: #{ae_loss_l2.1} parent=11 // pred_check_branch
        %163 = sbr.rel (%p161) target = $region16
      $region15: #{ae_loss_l2.1} parent=11 // pred_region
        _
      $region16: #{ae_loss_l2.1} parent=11 // pred_fallthru
        _
      // Predicated region
      $region17: #{ae_loss_l2.1} parent=11 // pred_check
        %p164 = pneg %p120
      $region18: #{ae_loss_l2.1} parent=11 // pred_check_branch
        %166 = sbr.rel (%p164) target = $region20
      $region19: #{ae_loss_l2.1} parent=11 // pred_region
        _
      $region20: #{ae_loss_l2.1} parent=11 // pred_fallthru
        _
    $region12: #{ae_loss_l2.1} parent=5 // pred_fallthru
      _
    %p167 = scmp.lt.s32.totalorder %s10, 2
    // Predicated region
    $region21: #{ae_loss_l2.1} parent=5 // pred_check
      %p168 = pneg %p167
    $region22: #{ae_loss_l2.1} parent=5 // pred_check_branch
      %170 = sbr.rel (%p168) target = $region24
    $region23: #{ae_loss_l2.1} parent=5 // pred_region
      // Predicated region
      $region25: #{ae_loss_l2.1} parent=23 // pred_check
        %p171 = pneg %p44
      $region26: #{ae_loss_l2.1} parent=23 // pred_check_branch
        %173 = sbr.rel (%p171) target = $region28
      $region27: #{ae_loss_l2.1} parent=23 // pred_region
        %s174 = sadd.s32 %s17, %s18
        %p175 = scmp.lt.s32.totalorder %s174, 1
        %s176 = scalar_select %p175, %s174, 1
        %s177 = smul.addr %s176, 8
        %s178 = scalar_lea.vmem %s0, %s177
        %s179 = sadd.s32 %s17, %s18
      $region28: #{ae_loss_l2.1} parent=23 // pred_fallthru
        _
      // Predicated region
      $region29: #{ae_loss_l2.1} parent=23 // pred_check
        %p180 = pneg %p72
      $region30: #{ae_loss_l2.1} parent=23 // pred_check_branch
        %182 = sbr.rel (%p180) target = $region32
      $region31: #{ae_loss_l2.1} parent=23 // pred_region
        %s183 = sadd.s32 %s17, %s18
        %p184 = scmp.lt.s32.totalorder %s183, 1
        %s185 = scalar_select %p184, %s183, 1
        %s186 = smul.addr %s185, 8
        %s187 = scalar_lea.vmem %s1, %s186
        %s188 = sadd.s32 %s17, %s18
      $region32: #{ae_loss_l2.1} parent=23 // pred_fallthru
        _
    $region24: #{ae_loss_l2.1} parent=5 // pred_fallthru
      _
    %p189 = scmp.le.s32.totalorder 1, %s10
    %p190 = scmp.lt.s32.totalorder %s10, 3
    %p191 = pnand %p189, %p190
    %p192 = pneg %p191
    // Predicated region
    $region33: #{ae_loss_l2.1} parent=5 // pred_check
      _
    $region34: #{ae_loss_l2.1} parent=5 // pred_check_branch
      %194 = sbr.rel (%p191) target = $region36
    $region35: #{ae_loss_l2.1} parent=5 // pred_region
      %s195 = ssub.s32 %s10, 1
      %s196 = sadd.s32 %s19, %s20
      %p197 = scmp.lt.s32.totalorder %s196, 1
      %s198 = scalar_select %p197, %s196, 1
      %s199 = smul.addr %s198, 8
      %s200 = scalar_lea.vmem %s0, %s199
      %p201 = pneg %p50
      %p202 = pneg %p47
      %s203 = sadd.s32 %s19, %s20
      %p204 = scmp.lt.s32.totalorder %s203, 1
      %s205 = scalar_select %p204, %s203, 1
      %s206 = smul.addr %s205, 8
      %s207 = scalar_lea.vmem %s1, %s206
      %p208 = pneg %p78
      %p209 = pneg %p75
      %p210 = pneg %p99
      %p211 = pneg %p96
      %p212 = pneg %p120
      %p213 = pneg %p117
      %p214 = pneg %p146
      %p215 = pneg %p143
      %p216 = scmp.lt.s32.totalorder %s19, 1
      %s217 = scalar_select %p216, %s19, 1
      %s218 = smul.addr %s217, 8
      %s219 = scalar_lea.vmem %s4, %s218
      %s220 = sadd.s32 %s19, %s20
      %p221 = scmp.lt.s32.totalorder %s220, 1
      %s222 = scalar_select %p221, %s220, 1
      %s223 = smul.addr %s222, 8
      %s224 = scalar_lea.vmem %s0, %s223
      %s225 = sadd.s32 %s19, %s20
      %s226 = sadd.s32 %s19, %s20
      %p227 = scmp.lt.s32.totalorder %s226, 1
      %s228 = scalar_select %p227, %s226, 1
      %s229 = smul.addr %s228, 8
      %s230 = scalar_lea.vmem %s1, %s229
      %s231 = sadd.s32 %s19, %s20
      %p232 = scmp.lt.s32.totalorder %s19, 1
      %s233 = scalar_select %p232, %s19, 1
      %s234 = smul.addr %s233, 8
      %s235 = scalar_lea.vmem %s4, %s234
      %p236 = scmp.eq.s32.totalorder %s20, 0
      // Predicated region
      $region37: #{ae_loss_l2.1} parent=35 // pred_check
        %p237 = pneg %p236
      $region38: #{ae_loss_l2.1} parent=35 // pred_check_branch
        %239 = sbr.rel (%p237) target = $region40
      $region39: #{ae_loss_l2.1} parent=35 // pred_region
        %240 = vst [vmem:[#allocation2] sm:$0xff] 0.0
      $region40: #{ae_loss_l2.1} parent=35 // pred_fallthru
        _
      %v241 = vld [vmem:[%s224] sm:$0xff]
      %v242 = vld [vmem:[%s230] sm:$0xff]
      %v243 = vlog2.pop %v241
      %v244 = vmul.f32 %v243, 0.6931472
      %v245 = vmax.f32 %v244, -100.0
      %v246 = vsub.f32 1.0, %v241
      %v247 = vlog2.pop %v246
      %v248 = vmul.f32 %v247, 0.6931472
      %v249 = vmax.f32 %v248, -100.0
      %v250 = vld [vmem:[#allocation2] sm:$0xff]
      %v251 = vsub.f32 %v245, %v249
      %v252 = vmul.f32 %v242, %v251
      %v253 = vadd.f32 %v249, %v252
      %v254 = vadd.f32 %v250, %v253
      %255 = vst [vmem:[#allocation2] sm:$0xff] %v254
      // Predicated region
      $region41: #{ae_loss_l2.1} parent=35 // pred_check
        %p256 = pneg %p236
      $region42: #{ae_loss_l2.1} parent=35 // pred_check_branch
        %258 = sbr.rel (%p256) target = $region44
      $region43: #{ae_loss_l2.1} parent=35 // pred_region
        %v259 = vld [vmem:[#allocation2] sm:$0xff]
        %260 = vadd.xlane.f32.xlu0 %v259
        %v261 = vpop.xlane.xlu0 %260
        %v262 = vrot.slane %v261, 4
        %v263 = vadd.f32 %v261, %v262
        %v264 = vrot.slane %v263, 2
        %v265 = vadd.f32 %v263, %v264
        %v266 = vrot.slane %v265, 1
        %v267 = vadd.f32 %v265, %v266
        %s268 = vtos %v267
        %s269 = smul.f32 %s268, -0.00048828125
        %v270 = vld [vmem:[%s2] sm:$0xff]
        %v271 = vld [vmem:[%s2 + $0x8] sm:$0xff]
        %v272 = vld [vmem:[%s2 + $0x10] sm:$0xff]
        %v273 = vld [vmem:[%s2 + $0x18] sm:$0xff]
        %v274 = vld [vmem:[%s2 + $0x20] sm:$0xff]
        %v275 = vld [vmem:[%s2 + $0x28] sm:$0xff]
        %v276 = vld [vmem:[%s2 + $0x30] sm:$0xff]
        %v277 = vld [vmem:[%s2 + $0x38] sm:$0xff]
        %v278 = vmul.f32 %v270, %v270
        %v279 = vmul.f32 %v271, %v271
        %v280 = vmul.f32 %v272, %v272
        %v281 = vmul.f32 %v273, %v273
        %v282 = vmul.f32 %v274, %v274
        %v283 = vmul.f32 %v275, %v275
        %v284 = vmul.f32 %v276, %v276
        %v285 = vmul.f32 %v277, %v277
        %v286 = vadd.f32 %v278, %v279
        %v287 = vadd.f32 %v286, %v280
        %v288 = vadd.f32 %v287, %v281
        %v289 = vadd.f32 %v288, %v282
        %v290 = vadd.f32 %v289, %v283
        %v291 = vadd.f32 %v290, %v284
        %v292 = vadd.f32 %v291, %v285
        %293 = vadd.xlane.f32.xlu0 %v292
        %v294 = vpop.xlane.xlu0 %293
        %v295 = vrot.slane %v294, 4
        %v296 = vadd.f32 %v294, %v295
        %v297 = vrot.slane %v296, 2
        %v298 = vadd.f32 %v296, %v297
        %v299 = vrot.slane %v298, 1
        %v300 = vadd.f32 %v298, %v299
        %s301 = vtos %v300
        %s302 = sadd.f32 %s301, 0.0
        %v303 = vld [vmem:[%s3] sm:$0xff]
        %v304 = vld [vmem:[%s3 + $0x8] sm:$0xff]
        %v305 = vld [vmem:[%s3 + $0x10] sm:$0xff]
        %v306 = vld [vmem:[%s3 + $0x18] sm:$0xff]
        %v307 = vld [vmem:[%s3 + $0x20] sm:$0xff]
        %v308 = vld [vmem:[%s3 + $0x28] sm:$0xff]
        %v309 = vld [vmem:[%s3 + $0x30] sm:$0xff]
        %v310 = vld [vmem:[%s3 + $0x38] sm:$0xff]
        %v311 = vld [vmem:[%s3 + $0x40] sm:$0xff]
        %v312 = vld [vmem:[%s3 + $0x48] sm:$0xff]
        %v313 = vld [vmem:[%s3 + $0x50] sm:$0xff]
        %v314 = vld [vmem:[%s3 + $0x58] sm:$0xff]
        %v315 = vld [vmem:[%s3 + $0x60] sm:$0xff]
        %v316 = vld [vmem:[%s3 + $0x68] sm:$0xff]
        %v317 = vld [vmem:[%s3 + $0x70] sm:$0xff]
        %v318 = vld [vmem:[%s3 + $0x78] sm:$0xff]
        %v319 = vld [vmem:[%s3 + $0x80] sm:$0xff]
        %v320 = vld [vmem:[%s3 + $0x88] sm:$0xff]
        %v321 = vld [vmem:[%s3 + $0x90] sm:$0xff]
        %v322 = vld [vmem:[%s3 + $0x98] sm:$0xff]
        %v323 = vld [vmem:[%s3 + $0xa0] sm:$0xff]
        %v324 = vld [vmem:[%s3 + $0xa8] sm:$0xff]
        %v325 = vld [vmem:[%s3 + $0xb0] sm:$0xff]
        %v326 = vld [vmem:[%s3 + $0xb8] sm:$0xff]
        %v327 = vld [vmem:[%s3 + $0xc0] sm:$0xff]
        %v328 = vld [vmem:[%s3 + $0xc8] sm:$0xff]
        %v329 = vld [vmem:[%s3 + $0xd0] sm:$0xff]
        %v330 = vld [vmem:[%s3 + $0xd8] sm:$0xff]
        %v331 = vld [vmem:[%s3 + $0xe0] sm:$0xff]
        %v332 = vld [vmem:[%s3 + $0xe8] sm:$0xff]
        %v333 = vld [vmem:[%s3 + $0xf0] sm:$0xff]
        %v334 = vld [vmem:[%s3 + $0xf8] sm:$0xff]
        %v335 = vmul.f32 %v303, %v303
        %v336 = vmul.f32 %v304, %v304
        %v337 = vmul.f32 %v305, %v305
        %v338 = vmul.f32 %v306, %v306
        %v339 = vmul.f32 %v307, %v307
        %v340 = vmul.f32 %v308, %v308
        %v341 = vmul.f32 %v309, %v309
        %v342 = vmul.f32 %v310, %v310
        %v343 = vmul.f32 %v311, %v311
        %v344 = vmul.f32 %v312, %v312
        %v345 = vmul.f32 %v313, %v313
        %v346 = vmul.f32 %v314, %v314
        %v347 = vmul.f32 %v315, %v315
        %v348 = vmul.f32 %v316, %v316
        %v349 = vmul.f32 %v317, %v317
        %v350 = vmul.f32 %v318, %v318
        %v351 = vmul.f32 %v319, %v319
        %v352 = vmul.f32 %v320, %v320
        %v353 = vmul.f32 %v321, %v321
        %v354 = vmul.f32 %v322, %v322
        %v355 = vmul.f32 %v323, %v323
        %v356 = vmul.f32 %v324, %v324
        %v357 = vmul.f32 %v325, %v325
        %v358 = vmul.f32 %v326, %v326
        %v359 = vmul.f32 %v327, %v327
        %v360 = vmul.f32 %v328, %v328
        %v361 = vmul.f32 %v329, %v329
        %v362 = vmul.f32 %v330, %v330
        %v363 = vmul.f32 %v331, %v331
        %v364 = vmul.f32 %v332, %v332
        %v365 = vmul.f32 %v333, %v333
        %v366 = vmul.f32 %v334, %v334
        %vm367 = vcmask 261120
        %v368 = vsel %vm367, %v335, 0.0
        %v369 = vsel %vm367, %v336, 0.0
        %v370 = vadd.f32 %v368, %v369
        %v371 = vsel %vm367, %v337, 0.0
        %v372 = vadd.f32 %v370, %v371
        %v373 = vsel %vm367, %v338, 0.0
        %v374 = vadd.f32 %v372, %v373
        %v375 = vsel %vm367, %v339, 0.0
        %v376 = vadd.f32 %v374, %v375
        %v377 = vsel %vm367, %v340, 0.0
        %v378 = vadd.f32 %v376, %v377
        %v379 = vsel %vm367, %v341, 0.0
        %v380 = vadd.f32 %v378, %v379
        %v381 = vsel %vm367, %v342, 0.0
        %v382 = vadd.f32 %v380, %v381
        %v383 = vsel %vm367, %v343, 0.0
        %v384 = vadd.f32 %v382, %v383
        %v385 = vsel %vm367, %v344, 0.0
        %v386 = vadd.f32 %v384, %v385
        %v387 = vsel %vm367, %v345, 0.0
        %v388 = vadd.f32 %v386, %v387
        %v389 = vsel %vm367, %v346, 0.0
        %v390 = vadd.f32 %v388, %v389
        %v391 = vsel %vm367, %v347, 0.0
        %v392 = vadd.f32 %v390, %v391
        %v393 = vsel %vm367, %v348, 0.0
        %v394 = vadd.f32 %v392, %v393
        %v395 = vsel %vm367, %v349, 0.0
        %v396 = vadd.f32 %v394, %v395
        %v397 = vsel %vm367, %v350, 0.0
        %v398 = vadd.f32 %v396, %v397
        %v399 = vsel %vm367, %v351, 0.0
        %v400 = vadd.f32 %v398, %v399
        %v401 = vsel %vm367, %v352, 0.0
        %v402 = vadd.f32 %v400, %v401
        %v403 = vsel %vm367, %v353, 0.0
        %v404 = vadd.f32 %v402, %v403
        %v405 = vsel %vm367, %v354, 0.0
        %v406 = vadd.f32 %v404, %v405
        %v407 = vsel %vm367, %v355, 0.0
        %v408 = vadd.f32 %v406, %v407
        %v409 = vsel %vm367, %v356, 0.0
        %v410 = vadd.f32 %v408, %v409
        %v411 = vsel %vm367, %v357, 0.0
        %v412 = vadd.f32 %v410, %v411
        %v413 = vsel %vm367, %v358, 0.0
        %v414 = vadd.f32 %v412, %v413
        %v415 = vsel %vm367, %v359, 0.0
        %v416 = vadd.f32 %v414, %v415
        %v417 = vsel %vm367, %v360, 0.0
        %v418 = vadd.f32 %v416, %v417
        %v419 = vsel %vm367, %v361, 0.0
        %v420 = vadd.f32 %v418, %v419
        %v421 = vsel %vm367, %v362, 0.0
        %v422 = vadd.f32 %v420, %v421
        %v423 = vsel %vm367, %v363, 0.0
        %v424 = vadd.f32 %v422, %v423
        %v425 = vsel %vm367, %v364, 0.0
        %v426 = vadd.f32 %v424, %v425
        %v427 = vsel %vm367, %v365, 0.0
        %v428 = vadd.f32 %v426, %v427
        %v429 = vsel %vm367, %v366, 0.0
        %v430 = vadd.f32 %v428, %v429
        %431 = vadd.xlane.f32.xlu0 %v430
        %v432 = vpop.xlane.xlu0 %431
        %v433 = vrot.slane %v432, 4
        %v434 = vadd.f32 %v432, %v433
        %v435 = vrot.slane %v434, 2
        %v436 = vadd.f32 %v434, %v435
        %v437 = vrot.slane %v436, 1
        %v438 = vadd.f32 %v436, %v437
        %s439 = vtos %v438
        %s440 = sadd.f32 %s302, %s439
        %p441 = scmp.eq.s32.totalorder %s19, 0
        %s442 = smul.f32 %s440, 0.005
        %s443 = scalar_select %p441, %s442, 0.0
        %s444 = sadd.f32 %s269, %s443
        %v445 = vstv %s444
        %446 = vst [vmem:[%s235] sm:$0xff] %v445
      $region44: #{ae_loss_l2.1} parent=35 // pred_fallthru
        _
      %p447 = scmp.lt.s32.totalorder %s19, 1
      %s448 = scalar_select %p447, %s19, 1
      %s449 = smul.addr %s448, 8
      %s450 = scalar_lea.vmem %s4, %s449
      // Predicated region
      $region45: #{ae_loss_l2.1} parent=35 // pred_check
        %p451 = pneg %p143
      $region46: #{ae_loss_l2.1} parent=35 // pred_check_branch
        %453 = sbr.rel (%p451) target = $region48
      $region47: #{ae_loss_l2.1} parent=35 // pred_region
        _
      $region48: #{ae_loss_l2.1} parent=35 // pred_fallthru
        _
    $region36: #{ae_loss_l2.1} parent=5 // pred_fallthru
      _
    %p454 = scmp.le.s32.totalorder 2, %s10
    // Predicated region
    $region49: #{ae_loss_l2.1} parent=5 // pred_check
      %p455 = pneg %p454
    $region50: #{ae_loss_l2.1} parent=5 // pred_check_branch
      %457 = sbr.rel (%p455) target = $region52
    $region51: #{ae_loss_l2.1} parent=5 // pred_region
      %s458 = ssub.s32 %s10, 2
      // Predicated region
      $region53: #{ae_loss_l2.1} parent=51 // pred_check
        %p459 = pneg %p149
      $region54: #{ae_loss_l2.1} parent=51 // pred_check_branch
        %461 = sbr.rel (%p459) target = $region56
      $region55: #{ae_loss_l2.1} parent=51 // pred_region
        %p462 = scmp.lt.s32.totalorder %s21, 1
        %s463 = scalar_select %p462, %s21, 1
        %s464 = smul.addr %s463, 8
        %s465 = scalar_lea.vmem %s4, %s464
      $region56: #{ae_loss_l2.1} parent=51 // pred_fallthru
        _
    $region52: #{ae_loss_l2.1} parent=5 // pred_fallthru
      _
  $region6: #{ae_loss_l2.1} parent=0 // loop_footer
    %s14 = sadd.s32 1, %s10
  $region7: #{ae_loss_l2.1} parent=0 // loop_footer_branch
    %9 = sbr.rel target = $region3
  $region8: #{ae_loss_l2.1} parent=0 // loop_exit
    _

</llo_original>
